<compile_context>
chip_gen: v6e
topology: v6e:2x2x1
jax: 0.10.0
libtpu: 0.0.40
codegen_flags: <defaults>
</compile_context>

<pallas_src>
import jax
import jax.numpy as jnp
from jax.experimental import pallas as pl
from jax.experimental.pallas import tpu as pltpu


def _round_up(x, m):
    return ((x + m - 1) // m) * m


def fm_kernel(idx_ref, tab_ref, out_ref):
    """idx_ref: [F, TB] int32 feature ids (batch on the lane axis).
       tab_ref: [D+1, NF] f32 pre-normalized table^T; last row = sum_d e^2 per id.
       out_ref: [1, TB]  f32 sigmoid logits (lane-dense)."""
    F = idx_ref.shape[0]
    nf = tab_ref.shape[1]
    tb = out_ref.shape[1]

    idx = idx_ref[...]                                           # [F, TB] int32
    vocab = jax.lax.broadcasted_iota(jnp.int32, (nf, tb), 0)     # [NF, TB]

    # Count matrix C[v, b] = #{f : idx[f, b] == v}; handles duplicate ids.
    # F is small and static -> short unrolled loop, temporaries stay [NF, TB].
    c = jnp.zeros((nf, tb), jnp.float32)
    for f in range(F):
        c = c + (vocab == idx[f:f + 1, :]).astype(jnp.float32)

    # One MXU matmul reconstructs both FM reductions:
    #   rows 0..D-1 -> sum_f e        (per dim, batch on lanes)
    #   row  D      -> sum_f sum_d e^2
    m = jnp.dot(tab_ref[...], c,
                preferred_element_type=jnp.float32,
                precision=jax.lax.Precision.HIGHEST)             # [D+1, TB]
    s = m[:-1, :]                                                # [D, TB]
    sum_of_square = m[-1:, :]                                    # [1, TB]
    square_of_sum = jnp.sum(s * s, axis=0, keepdims=True)        # [1, TB]

    out_ref[...] = jax.nn.sigmoid(0.5 * (square_of_sum - sum_of_square))


def _choose_tb(B, F, D, nf, tb=None):
    b128 = _round_up(max(B, 1), 128)
    if tb is not None:
        tb = int(max(128, _round_up(int(tb), 128)))
        return min(tb, b128)
    # Generation-aware VMEM budget (v5e/v6e: 128 MiB, v7x: 64 MiB physical).
    try:
        vmem = int(pltpu.get_tpu_info().vmem_capacity_bytes)
    except Exception:
        vmem = 64 * 1024 * 1024
    budget = min(vmem // 4, 16 * 1024 * 1024)
    # f32 bytes per lane column: double-buffered idx blocks + count matrix +
    # matmul result + elementwise temporaries + output.
    per_col = 4 * (2 * F + 2 * nf + 2 * (D + 1) + 8)
    tb = (budget // max(per_col, 1)) // 128 * 128
    tb = int(max(128, min(4096, tb)))
    # >= 2 grid steps when the batch allows -> both v7x TensorCores engage.
    if b128 >= 256:
        tb = min(tb, _round_up(b128 // 2, 128))
    return min(tb, b128)


def fm_forward(u, i, user_df, item_df, emb_table, *, tb=None):
    """Glue: index lookup + table pre-normalization in JAX, hot path in Pallas.

    u, i            : [B] int32 user / item ids
    user_df, item_df: [n_users, Fu] / [n_items, Fi] int32 feature-index tables
    emb_table       : [n_features, D] float32 embedding weights
    returns         : [B] float32 sigmoid logits (torch.squeeze semantics)
    """
    users = user_df[u]                                           # [B, Fu]
    items = item_df[i]                                           # [B, Fi]
    all_idx = jnp.concatenate([users, items], axis=1)            # [B, F]
    B, F = all_idx.shape
    nf, D = emb_table.shape

    # nn.Embedding(max_norm=1) forward semantics: looked-up rows with L2 norm
    # > 1 are rescaled to norm 1 (eps=1e-7). Applied once to the f32 table.
    norm = jnp.sqrt(jnp.sum(emb_table * emb_table, axis=1, keepdims=True))
    table = emb_table * jnp.where(norm > 1.0, 1.0 / (norm + 1e-7), 1.0)

    # Transposed table augmented with per-row sum-of-squares -> one matmul in
    # the kernel yields both sum_f e and sum_f sum_d e^2.
    rowssq = jnp.sum(table * table, axis=1)                      # [nf]
    tab_aug = jnp.concatenate([table.T, rowssq[None, :]], axis=0)  # [D+1, nf]
    nf_pad = _round_up(nf, 8)
    if nf_pad != nf:
        tab_aug = jnp.pad(tab_aug, ((0, 0), (0, nf_pad - nf)))

    # Only the indices travel per-batch through HBM (batch on lanes).
    idx_t = all_idx.T.astype(jnp.int32)                          # [F, B]

    tb = _choose_tb(B, F, D, nf_pad, tb)
    B_pad = _round_up(B, tb)
    if B_pad != B:
        # Index-0 padding columns produce harmless finite logits; sliced off.
        idx_t = jnp.pad(idx_t, ((0, 0), (0, B_pad - B)))

    logits = pl.pallas_call(
        fm_kernel,
        out_shape=jax.ShapeDtypeStruct((1, B_pad), jnp.float32),
        grid=(B_pad // tb,),
        in_specs=[
            pl.BlockSpec((F, tb), lambda b: (0, b)),          # indices, batched
            pl.BlockSpec((D + 1, nf_pad), lambda b: (0, 0)),  # table, VMEM-resident
        ],
        out_specs=pl.BlockSpec((1, tb), lambda b: (0, b)),
        compiler_params=pltpu.CompilerParams(
            dimension_semantics=("parallel",),
            vmem_limit_bytes=32 * 1024 * 1024),
    )(idx_t, tab_aug)
    return logits[0, :B]                                         # [B]


def fm_reference(u, i, user_df, item_df, emb_table):
    """Pure-JAX reference of the same forward math (f32 throughout)."""
    idx = jnp.concatenate([user_df[u], item_df[i]], axis=1)      # [B, F]
    norm = jnp.sqrt(jnp.sum(emb_table * emb_table, axis=1, keepdims=True))
    table = emb_table * jnp.where(norm > 1.0, 1.0 / (norm + 1e-7), 1.0)
    e = table[idx]                                               # [B, F, D]
    out = 0.5 * jnp.sum(jnp.sum(e, axis=1) ** 2 - jnp.sum(e ** 2, axis=1),
                        axis=-1)
    return jax.nn.sigmoid(out)


if __name__ == "__main__":
    key = jax.random.PRNGKey(0)
    k_emb, k_udf, k_idf, k_u, k_i, k_u2, k_i2 = jax.random.split(key, 7)

    # Small deterministic problem.
    n_features = 40      # total vocabulary of feature ids
    dim = 32             # embedding dim
    n_users, n_items = 10, 12
    Fu, Fi = 3, 3        # features per user / per item
    B = 8                # batch size

    # nn.Embedding default init: N(0, 1).
    emb_table = jax.random.normal(k_emb, (n_features, dim), dtype=jnp.float32)

    # Synthetic user_df / item_df feature-index tables (integer feature ids).
    user_df = jax.random.randint(k_udf, (n_users, Fu), 0, n_features // 2,
                                 dtype=jnp.int32)
    item_df = jax.random.randint(k_idf, (n_items, Fi), n_features // 2,
                                 n_features, dtype=jnp.int32)

    u = jax.random.randint(k_u, (B,), 0, n_users, dtype=jnp.int32)
    i = jax.random.randint(k_i, (B,), 0, n_items, dtype=jnp.int32)

    out = fm_forward(u, i, user_df, item_df, emb_table)
    jax.block_until_ready(out)
    assert out.shape == (B,)
    ref = fm_reference(u, i, user_df, item_df, emb_table)
    assert jnp.allclose(out, ref, atol=2e-3, rtol=2e-3), (out, ref)

    # Second check: batch that does not divide the lane tile -> exercises the
    # multi-step "parallel" grid and the lane-padding path.
    B2 = 300
    u2 = jax.random.randint(k_u2, (B2,), 0, n_users, dtype=jnp.int32)
    i2 = jax.random.randint(k_i2, (B2,), 0, n_items, dtype=jnp.int32)
    out2 = fm_forward(u2, i2, user_df, item_df, emb_table, tb=128)
    jax.block_until_ready(out2)
    ref2 = fm_reference(u2, i2, user_df, item_df, emb_table)
    assert out2.shape == (B2,)
    assert jnp.allclose(out2, ref2, atol=2e-3, rtol=2e-3), (out2, ref2)

    # Third check: default (heuristic) tile on the larger batch.
    out3 = fm_forward(u2, i2, user_df, item_df, emb_table)
    jax.block_until_ready(out3)
    assert jnp.allclose(out3, ref2, atol=2e-3, rtol=2e-3), (out3, ref2)

    print("KERNEL_OK")
</pallas_src>

<mosaic_0001>
module attributes {stable_mosaic.version = 11 : i64} {
  func.func @fm_kernel(%arg0: i32, %arg1: memref<6x128xi32, #tpu.memory_space<vmem>>, %arg2: memref<33x40xf32, #tpu.memory_space<vmem>>, %arg3: memref<1x128xf32, #tpu.memory_space<vmem>>) attributes {dimension_semantics = [#tpu.dimension_semantics<parallel>], iteration_bounds = array<i64: 1>, scalar_prefetch = 0 : i64, scratch_operands = 0 : i64, tpu.core_type = #tpu.core_type<tc>, window_params = [{transform_indices = @transform_0, window_bounds = array<i64: 6, 128>}, {pipeline_mode = #tpu.pipeline_mode<synchronous>, transform_indices = @transform_1, window_bounds = array<i64: 33, 40>}, {transform_indices = @transform_2, window_bounds = array<i64: 1, 128>}]} {
    %c0 = arith.constant 0 : index
    %c0_0 = arith.constant 0 : index
    %0 = vector.load %arg1[%c0, %c0_0] : memref<6x128xi32, #tpu.memory_space<vmem>>, vector<6x128xi32>
    %1 = tpu.iota {dimensions = array<i32: 0>} : vector<40x128xi32>
    %cst = arith.constant 0.000000e+00 : f32
    %2 = vector.broadcast %cst : f32 to vector<40x128xf32>
    %3 = vector.extract_strided_slice %0 {offsets = [0, 0], sizes = [1, 128], strides = [1, 1]} : vector<6x128xi32> to vector<1x128xi32>
    %4 = vector.broadcast %3 : vector<1x128xi32> to vector<40x128xi32>
    %5 = arith.cmpi eq, %1, %4 : vector<40x128xi32>
    %6 = arith.extui %5 : vector<40x128xi1> to vector<40x128xi32>
    %7 = arith.sitofp %6 : vector<40x128xi32> to vector<40x128xf32>
    %8 = arith.addf %2, %7 : vector<40x128xf32>
    %9 = vector.extract_strided_slice %0 {offsets = [1, 0], sizes = [1, 128], strides = [1, 1]} : vector<6x128xi32> to vector<1x128xi32>
    %10 = vector.broadcast %9 : vector<1x128xi32> to vector<40x128xi32>
    %11 = arith.cmpi eq, %1, %10 : vector<40x128xi32>
    %12 = arith.extui %11 : vector<40x128xi1> to vector<40x128xi32>
    %13 = arith.sitofp %12 : vector<40x128xi32> to vector<40x128xf32>
    %14 = arith.addf %8, %13 : vector<40x128xf32>
    %15 = vector.extract_strided_slice %0 {offsets = [2, 0], sizes = [1, 128], strides = [1, 1]} : vector<6x128xi32> to vector<1x128xi32>
    %16 = vector.broadcast %15 : vector<1x128xi32> to vector<40x128xi32>
    %17 = arith.cmpi eq, %1, %16 : vector<40x128xi32>
    %18 = arith.extui %17 : vector<40x128xi1> to vector<40x128xi32>
    %19 = arith.sitofp %18 : vector<40x128xi32> to vector<40x128xf32>
    %20 = arith.addf %14, %19 : vector<40x128xf32>
    %21 = vector.extract_strided_slice %0 {offsets = [3, 0], sizes = [1, 128], strides = [1, 1]} : vector<6x128xi32> to vector<1x128xi32>
    %22 = vector.broadcast %21 : vector<1x128xi32> to vector<40x128xi32>
    %23 = arith.cmpi eq, %1, %22 : vector<40x128xi32>
    %24 = arith.extui %23 : vector<40x128xi1> to vector<40x128xi32>
    %25 = arith.sitofp %24 : vector<40x128xi32> to vector<40x128xf32>
    %26 = arith.addf %20, %25 : vector<40x128xf32>
    %27 = vector.extract_strided_slice %0 {offsets = [4, 0], sizes = [1, 128], strides = [1, 1]} : vector<6x128xi32> to vector<1x128xi32>
    %28 = vector.broadcast %27 : vector<1x128xi32> to vector<40x128xi32>
    %29 = arith.cmpi eq, %1, %28 : vector<40x128xi32>
    %30 = arith.extui %29 : vector<40x128xi1> to vector<40x128xi32>
    %31 = arith.sitofp %30 : vector<40x128xi32> to vector<40x128xf32>
    %32 = arith.addf %26, %31 : vector<40x128xf32>
    %33 = vector.extract_strided_slice %0 {offsets = [5, 0], sizes = [1, 128], strides = [1, 1]} : vector<6x128xi32> to vector<1x128xi32>
    %34 = vector.broadcast %33 : vector<1x128xi32> to vector<40x128xi32>
    %35 = arith.cmpi eq, %1, %34 : vector<40x128xi32>
    %36 = arith.extui %35 : vector<40x128xi1> to vector<40x128xi32>
    %37 = arith.sitofp %36 : vector<40x128xi32> to vector<40x128xf32>
    %38 = arith.addf %32, %37 : vector<40x128xf32>
    %c0_1 = arith.constant 0 : index
    %c0_2 = arith.constant 0 : index
    %39 = vector.load %arg2[%c0_1, %c0_2] : memref<33x40xf32, #tpu.memory_space<vmem>>, vector<33x40xf32>
    %cst_3 = arith.constant dense<0.000000e+00> : vector<33x128xf32>
    %40 = tpu.matmul %39, %38, %cst_3 {dimension_numbers = #tpu.dot_dimension_numbers<[1], [0], [0], [1], [0, 0, 1, 1], [], []>, precision = #tpu.contract_precision<fp32>} : vector<33x40xf32>, vector<40x128xf32>, vector<33x128xf32> -> vector<33x128xf32>
    %41 = vector.extract_strided_slice %40 {offsets = [0, 0], sizes = [32, 128], strides = [1, 1]} : vector<33x128xf32> to vector<32x128xf32>
    %42 = vector.extract_strided_slice %40 {offsets = [32, 0], sizes = [1, 128], strides = [1, 1]} : vector<33x128xf32> to vector<1x128xf32>
    %43 = arith.mulf %41, %41 : vector<32x128xf32>
    %cst_4 = arith.constant dense<0.000000e+00> : vector<128xf32>
    %44 = vector.multi_reduction <add>, %43, %cst_4 [0] : vector<32x128xf32> to vector<128xf32>
    %45 = vector.shape_cast %44 : vector<128xf32> to vector<1x128xf32>
    %46 = arith.subf %45, %42 : vector<1x128xf32>
    %cst_5 = arith.constant 5.000000e-01 : f32
    %47 = vector.broadcast %cst_5 : f32 to vector<1x128xf32>
    %48 = arith.mulf %47, %46 : vector<1x128xf32>
    %49 = arith.negf %48 : vector<1x128xf32>
    %50 = math.exp %49 : vector<1x128xf32>
    %cst_6 = arith.constant 1.000000e+00 : f32
    %51 = vector.broadcast %cst_6 : f32 to vector<1x128xf32>
    %52 = arith.addf %51, %50 : vector<1x128xf32>
    %53 = arith.divf %51, %52 : vector<1x128xf32>
    %c0_7 = arith.constant 0 : index
    %c0_8 = arith.constant 0 : index
    %54 = vector.load %arg3[%c0_7, %c0_8] : memref<1x128xf32, #tpu.memory_space<vmem>>, vector<1x128xf32>
    tpu.vector_store %arg3[%c0_7, %c0_8], %53 {strides = array<i32>} : memref<1x128xf32, #tpu.memory_space<vmem>>, vector<1x128xf32>,
    return
  }
  func.func @transform_0(%arg0: i32) -> (i32, i32) {
    %c0_i32 = arith.constant 0 : i32
    %c0_i32_0 = arith.constant 0 : i32
    return %c0_i32, %arg0 : i32, i32
  }
  func.func @transform_1(%arg0: i32) -> (i32, i32) {
    %c0_i32 = arith.constant 0 : i32
    %c0_i32_0 = arith.constant 0 : i32
    %c0_i32_1 = arith.constant 0 : i32
    return %c0_i32, %c0_i32_0 : i32, i32
  }
  func.func @transform_2(%arg0: i32) -> (i32, i32) {
    %c0_i32 = arith.constant 0 : i32
    %c0_i32_0 = arith.constant 0 : i32
    return %c0_i32, %arg0 : i32, i32
  }
}

</mosaic_0001>

<llo_original>
// kernel: tpu_custom_call.1
$region0: #{tpu_custom_call.1}
  #allocation0 [shape = 'u32[]', space=smem, size = 0x4, offset = 0x4, fixed_abs, tag = 'smem constant byte address 0x4 - core index']
  #allocation1 [shape = 'u32[144,128]{1,0:T(1,128)}', space=vmem, size = 0x12000, scoped, tag = 'internal scratch']
  %s0 = inlined_call_operand.hbm [shape: s32[6,128], index: 0, kind: input, shape index: {}]
  %s1 = inlined_call_operand.hbm [shape: f32[33,40], index: 1, kind: input, shape index: {}]
  %s2 = inlined_call_operand.hbm [shape: f32[1,128], index: 2, kind: output, shape index: {}]
  %s3 = sld [smem:[#allocation0]]
  $region26: #{tpu_custom_call.1} parent=0
    _
  %s5 = ssub.s32 1, %s3
  %s6 = scalar_select 0, %s5, %s3
  $region1: #{tpu_custom_call.1} parent=0
    #allocation2 [shape = 'u8[4096]{0}', space=vmem, size = 0x1000, scoped, tag = 'input window, operand 0, single buffered']
    #allocation3 [shape = 's32[1]{0}', space=sflag, size = 0x4, scoped, tag = 'scoped memory for tpu_custom_call.1']
    #allocation4 [shape = 's32[1]{0}', space=sflag, size = 0x4, scoped, tag = 'scoped memory for tpu_custom_call.1']
    #allocation5 [shape = 'u8[20480]{0}', space=vmem, size = 0x5000, scoped, tag = 'input window, operand 1, single buffered']
    #allocation6 [shape = 's32[1]{0}', space=sflag, size = 0x4, scoped, tag = 'scoped memory for tpu_custom_call.1']
    #allocation7 [shape = 'u8[512]{0}', space=vmem, size = 0x400, scoped, tag = 'output window, operand 0, single buffered']
    %7 = vsyncpa [#allocation3], 0
    %8 = vsyncpa [#allocation6], 0
    %9 = vsyncpa [#allocation4], 0
    // Predicated region
    $region2: #{tpu_custom_call.1} parent=1 // pred_check
      _
    $region3: #{tpu_custom_call.1} parent=1 // pred_check_branch
      %11 = sbr.rel (0) target = $region5
    $region4: #{tpu_custom_call.1} parent=1 // pred_region
      %s13 = ssub.s32 128, 128
      %14 = vsyncadd [#allocation3], %s13
      %s16 = sshll.u32 [#allocation2], 4
      %s17 = int_to_ptr.vmem [resolvable:$true] %s16
      %19 = dma.hbm_to_vmem [thread:$0]  %s0, 128, %s17, [#allocation3]
    $region5: #{tpu_custom_call.1} parent=1 // pred_fallthru
      _
    // Predicated region
    $region6: #{tpu_custom_call.1} parent=1 // pred_check
      _
    $region7: #{tpu_custom_call.1} parent=1 // pred_check_branch
      %21 = sbr.rel (0) target = $region9
    $region8: #{tpu_custom_call.1} parent=1 // pred_region
      %s23 = ssub.s32 640, 640
      %24 = vsyncadd [#allocation6], %s23
      %s25 = sshll.u32 [#allocation5], 4
      %s26 = int_to_ptr.vmem [resolvable:$true] %s25
      %31 = dma.hbm_to_vmem [thread:$0]  %s1, 640, %s26, [#allocation6], 128, 128, 8
    $region9: #{tpu_custom_call.1} parent=1 // pred_fallthru
      _
    // Predicated region
    $region10: #{tpu_custom_call.1} parent=1 // pred_check
      _
    $region11: #{tpu_custom_call.1} parent=1 // pred_check_branch
      %33 = sbr.rel (0) target = $region13
    $region12: #{tpu_custom_call.1} parent=1 // pred_region
      %34 = dma.done [#allocation3], 128
    $region13: #{tpu_custom_call.1} parent=1 // pred_fallthru
      _
    // Predicated region
    $region14: #{tpu_custom_call.1} parent=1 // pred_check
      _
    $region15: #{tpu_custom_call.1} parent=1 // pred_check_branch
      %36 = sbr.rel (0) target = $region17
    $region16: #{tpu_custom_call.1} parent=1 // pred_region
      %37 = dma.done [#allocation6], 640
    $region17: #{tpu_custom_call.1} parent=1 // pred_fallthru
      _
    %v38 = vld [vmem:[#allocation2] sm:$0x3f]
    %v39 = vlaneseq
    %v40 = vshrl.u32 %v39, 7
    %v41 = vadd.s32 %v40, 8
    %v42 = vadd.s32 %v40, 16
    %v43 = vadd.s32 %v40, 24
    %v44 = vadd.s32 %v40, 32
    %v45 = vlaneseq
    %v46 = vshrl.u32 %v45, 7
    %v47 = vsub.s32 0, %v46
    %v48 = vrot.slane %v38, %v47
    %vm49 = vcmp.eq.s32.totalorder %v40, %v48
    %vm50 = vcmp.eq.s32.totalorder %v41, %v48
    %vm51 = vcmp.eq.s32.totalorder %v42, %v48
    %vm52 = vcmp.eq.s32.totalorder %v43, %v48
    %vm53 = vcmp.eq.s32.totalorder %v44, %v48
    %v54 = vsel %vm49, 1, 0
    %v55 = vsel %vm50, 1, 0
    %v56 = vsel %vm51, 1, 0
    %v57 = vsel %vm52, 1, 0
    %v58 = vsel %vm53, 1, 0
    %v59 = vcvt.s32.f32 %v54
    %v60 = vcvt.s32.f32 %v55
    %v61 = vcvt.s32.f32 %v56
    %v62 = vcvt.s32.f32 %v57
    %v63 = vcvt.s32.f32 %v58
    %v64 = vadd.f32 %v59, 0.0
    %v65 = vadd.f32 %v60, 0.0
    %v66 = vadd.f32 %v61, 0.0
    %v67 = vadd.f32 %v62, 0.0
    %v68 = vadd.f32 %v63, 0.0
    %v69 = vlaneseq
    %v70 = vshrl.u32 %v69, 7
    %v71 = vsub.s32 1, %v70
    %v72 = vrot.slane %v38, %v71
    %vm73 = vcmp.eq.s32.totalorder %v40, %v72
    %vm74 = vcmp.eq.s32.totalorder %v41, %v72
    %vm75 = vcmp.eq.s32.totalorder %v42, %v72
    %vm76 = vcmp.eq.s32.totalorder %v43, %v72
    %vm77 = vcmp.eq.s32.totalorder %v44, %v72
    %v78 = vsel %vm73, 1, 0
    %v79 = vsel %vm74, 1, 0
    %v80 = vsel %vm75, 1, 0
    %v81 = vsel %vm76, 1, 0
    %v82 = vsel %vm77, 1, 0
    %v83 = vcvt.s32.f32 %v78
    %v84 = vcvt.s32.f32 %v79
    %v85 = vcvt.s32.f32 %v80
    %v86 = vcvt.s32.f32 %v81
    %v87 = vcvt.s32.f32 %v82
    %v88 = vadd.f32 %v64, %v83
    %v89 = vadd.f32 %v65, %v84
    %v90 = vadd.f32 %v66, %v85
    %v91 = vadd.f32 %v67, %v86
    %v92 = vadd.f32 %v68, %v87
    %v93 = vlaneseq
    %v94 = vshrl.u32 %v93, 7
    %v95 = vsub.s32 2, %v94
    %v96 = vrot.slane %v38, %v95
    %vm97 = vcmp.eq.s32.totalorder %v40, %v96
    %vm98 = vcmp.eq.s32.totalorder %v41, %v96
    %vm99 = vcmp.eq.s32.totalorder %v42, %v96
    %vm100 = vcmp.eq.s32.totalorder %v43, %v96
    %vm101 = vcmp.eq.s32.totalorder %v44, %v96
    %v102 = vsel %vm97, 1, 0
    %v103 = vsel %vm98, 1, 0
    %v104 = vsel %vm99, 1, 0
    %v105 = vsel %vm100, 1, 0
    %v106 = vsel %vm101, 1, 0
    %v107 = vcvt.s32.f32 %v102
    %v108 = vcvt.s32.f32 %v103
    %v109 = vcvt.s32.f32 %v104
    %v110 = vcvt.s32.f32 %v105
    %v111 = vcvt.s32.f32 %v106
    %v112 = vadd.f32 %v88, %v107
    %v113 = vadd.f32 %v89, %v108
    %v114 = vadd.f32 %v90, %v109
    %v115 = vadd.f32 %v91, %v110
    %v116 = vadd.f32 %v92, %v111
    %v117 = vlaneseq
    %v118 = vshrl.u32 %v117, 7
    %v119 = vsub.s32 3, %v118
    %v120 = vrot.slane %v38, %v119
    %vm121 = vcmp.eq.s32.totalorder %v40, %v120
    %vm122 = vcmp.eq.s32.totalorder %v41, %v120
    %vm123 = vcmp.eq.s32.totalorder %v42, %v120
    %vm124 = vcmp.eq.s32.totalorder %v43, %v120
    %vm125 = vcmp.eq.s32.totalorder %v44, %v120
    %v126 = vsel %vm121, 1, 0
    %v127 = vsel %vm122, 1, 0
    %v128 = vsel %vm123, 1, 0
    %v129 = vsel %vm124, 1, 0
    %v130 = vsel %vm125, 1, 0
    %v131 = vcvt.s32.f32 %v126
    %v132 = vcvt.s32.f32 %v127
    %v133 = vcvt.s32.f32 %v128
    %v134 = vcvt.s32.f32 %v129
    %v135 = vcvt.s32.f32 %v130
    %v136 = vadd.f32 %v112, %v131
    %v137 = vadd.f32 %v113, %v132
    %v138 = vadd.f32 %v114, %v133
    %v139 = vadd.f32 %v115, %v134
    %v140 = vadd.f32 %v116, %v135
    %v141 = vlaneseq
    %v142 = vshrl.u32 %v141, 7
    %v143 = vsub.s32 4, %v142
    %v144 = vrot.slane %v38, %v143
    %vm145 = vcmp.eq.s32.totalorder %v40, %v144
    %vm146 = vcmp.eq.s32.totalorder %v41, %v144
    %vm147 = vcmp.eq.s32.totalorder %v42, %v144
    %vm148 = vcmp.eq.s32.totalorder %v43, %v144
    %vm149 = vcmp.eq.s32.totalorder %v44, %v144
    %v150 = vsel %vm145, 1, 0
    %v151 = vsel %vm146, 1, 0
    %v152 = vsel %vm147, 1, 0
    %v153 = vsel %vm148, 1, 0
    %v154 = vsel %vm149, 1, 0
    %v155 = vcvt.s32.f32 %v150
    %v156 = vcvt.s32.f32 %v151
    %v157 = vcvt.s32.f32 %v152
    %v158 = vcvt.s32.f32 %v153
    %v159 = vcvt.s32.f32 %v154
    %v160 = vadd.f32 %v136, %v155
    %v161 = vadd.f32 %v137, %v156
    %v162 = vadd.f32 %v138, %v157
    %v163 = vadd.f32 %v139, %v158
    %v164 = vadd.f32 %v140, %v159
    %v165 = vlaneseq
    %v166 = vshrl.u32 %v165, 7
    %v167 = vsub.s32 5, %v166
    %v168 = vrot.slane %v38, %v167
    %vm169 = vcmp.eq.s32.totalorder %v40, %v168
    %vm170 = vcmp.eq.s32.totalorder %v41, %v168
    %vm171 = vcmp.eq.s32.totalorder %v42, %v168
    %vm172 = vcmp.eq.s32.totalorder %v43, %v168
    %vm173 = vcmp.eq.s32.totalorder %v44, %v168
    %v174 = vsel %vm169, 1, 0
    %v175 = vsel %vm170, 1, 0
    %v176 = vsel %vm171, 1, 0
    %v177 = vsel %vm172, 1, 0
    %v178 = vsel %vm173, 1, 0
    %v179 = vcvt.s32.f32 %v174
    %v180 = vcvt.s32.f32 %v175
    %v181 = vcvt.s32.f32 %v176
    %v182 = vcvt.s32.f32 %v177
    %v183 = vcvt.s32.f32 %v178
    %v184 = vadd.f32 %v160, %v179
    %v185 = vadd.f32 %v161, %v180
    %v186 = vadd.f32 %v162, %v181
    %v187 = vadd.f32 %v163, %v182
    %v188 = vadd.f32 %v164, %v183
    %v189 = vld [vmem:[#allocation5] sm:$0xff]
    %v190 = vld [vmem:[#allocation5 + $0x8] sm:$0xff]
    %v191 = vld [vmem:[#allocation5 + $0x10] sm:$0xff]
    %v192 = vld [vmem:[#allocation5 + $0x18] sm:$0xff]
    %v193 = vld [vmem:[#allocation5 + $0x20] sm:$0x1]
    %vm194 = vcmask 326656
    %v196 = vsel %vm194, %v189, 0
    %v199 = vsel %vm194, %v190, 0
    %v202 = vsel %vm194, %v191, 0
    %v205 = vsel %vm194, %v192, 0
    %v208 = vsel %vm194, %v193, 0
    %210 = vmatprep.subr.mxu0 0.0
    %211 = vmatpush1.msra.mxu0 0.0
    %212 = vmatprep.subr.mxu0 0.0
    %213 = vmatpush1.msra.mxu0 0.0
    %214 = vmatprep.subr.mxu0 0.0
    %215 = vmatpush1.msra.mxu0 0.0
    %216 = vmatprep.subr.mxu0 0.0
    %217 = vmatpush1.msra.mxu0 0.0
    %218 = vmatprep.subr.mxu0 0.0
    %219 = vmatpush1.msra.mxu0 0.0
    %220 = vmatprep.subr.mxu0 0.0
    %221 = vmatpush1.msra.mxu0 0.0
    %222 = vmatprep.subr.mxu0 0.0
    %223 = vmatpush1.msra.mxu0 0.0
    %224 = vmatprep.subr.mxu0 0.0
    %225 = vmatpush1.msra.mxu0 0.0
    %226 = vmatprep.subr.mxu0 0.0
    %227 = vmatpush1.msra.mxu0 0.0
    %228 = vmatprep.subr.mxu0 0.0
    %229 = vmatpush1.msra.mxu0 0.0
    %230 = vmatprep.subr.mxu0 0.0
    %231 = vmatpush1.msra.mxu0 0.0
    %232 = vmatprep.subr.mxu0 0.0
    %v233 = vand.u32 %v188, 4294901760
    %234 = vmatpush1.msra.mxu0 %v233
    %235 = vmatprep.subr.mxu0 0.0
    %v236 = vand.u32 %v187, 4294901760
    %237 = vmatpush1.msra.mxu0 %v236
    %238 = vmatprep.subr.mxu0 0.0
    %v239 = vand.u32 %v186, 4294901760
    %240 = vmatpush1.msra.mxu0 %v239
    %241 = vmatprep.subr.mxu0 0.0
    %v242 = vand.u32 %v185, 4294901760
    %243 = vmatpush1.msra.mxu0 %v242
    %244 = vmatprep.subr.mxu0 0.0
    %v245 = vand.u32 %v184, 4294901760
    %246 = vmatpush1.msra.mxu0 %v245
    %247 = vmatprep.subr.mxu0 0.0
    %248 = vmatpush2.msra.mxu0 0.0
    %249 = vmatprep.subr.mxu0 0.0
    %250 = vmatpush2.msra.mxu0 0.0
    %251 = vmatprep.subr.mxu0 0.0
    %252 = vmatpush2.msra.mxu0 0.0
    %253 = vmatprep.subr.mxu0 0.0
    %254 = vmatpush2.msra.mxu0 0.0
    %255 = vmatprep.subr.mxu0 0.0
    %256 = vmatpush2.msra.mxu0 0.0
    %257 = vmatprep.subr.mxu0 0.0
    %258 = vmatpush2.msra.mxu0 0.0
    %259 = vmatprep.subr.mxu0 0.0
    %260 = vmatpush2.msra.mxu0 0.0
    %261 = vmatprep.subr.mxu0 0.0
    %262 = vmatpush2.msra.mxu0 0.0
    %263 = vmatprep.subr.mxu0 0.0
    %264 = vmatpush2.msra.mxu0 0.0
    %265 = vmatprep.subr.mxu0 0.0
    %266 = vmatpush2.msra.mxu0 0.0
    %267 = vmatprep.subr.mxu0 0.0
    %268 = vmatpush2.msra.mxu0 0.0
    %269 = vmatprep.subr.mxu0 0.0
    %270 = vmatpush2.msra.mxu0 0.0
    %271 = vmatprep.subr.mxu0 0.0
    %272 = vmatpush2.msra.mxu0 0.0
    %273 = vmatprep.subr.mxu0 0.0
    %274 = vmatpush2.msra.mxu0 0.0
    %275 = vmatprep.subr.mxu0 0.0
    %276 = vmatpush2.msra.mxu0 0.0
    %277 = vmatprep.subr.mxu0 0.0
    %278 = vmatpush2.msra.mxu0 0.0
    %279 = vmatprep.mubr.f32.mxu0 0.0
    %v280 = vand.u32 %v196, 4294901760
    %v281 = vsub.f32 %v196, %v280
    %v282 = vand.u32 %v281, 4294901760
    %v283 = vsub.f32 %v281, %v282
    %v284 = vand.u32 %v283, 4294901760
    %285 = vmatmul.mubr.f32.gmra.mxu0 %v284
    %v286 = vpop.f32.mrf.mxu0
    %v287 = vadd.f32 0.0, %v286
    %v288 = vpop.f32.mrf.mxu0
    %289 = vmatprep.mubr.f32.mxu0 0.0
    %v290 = vand.u32 %v199, 4294901760
    %v291 = vsub.f32 %v199, %v290
    %v292 = vand.u32 %v291, 4294901760
    %v293 = vsub.f32 %v291, %v292
    %v294 = vand.u32 %v293, 4294901760
    %295 = vmatmul.mubr.f32.gmra.mxu0 %v294
    %v296 = vpop.f32.mrf.mxu0
    %v297 = vadd.f32 0.0, %v296
    %v298 = vpop.f32.mrf.mxu0
    %299 = vmatprep.mubr.f32.mxu0 0.0
    %v300 = vand.u32 %v202, 4294901760
    %v301 = vsub.f32 %v202, %v300
    %v302 = vand.u32 %v301, 4294901760
    %v303 = vsub.f32 %v301, %v302
    %v304 = vand.u32 %v303, 4294901760
    %305 = vmatmul.mubr.f32.gmra.mxu0 %v304
    %v306 = vpop.f32.mrf.mxu0
    %v307 = vadd.f32 0.0, %v306
    %v308 = vpop.f32.mrf.mxu0
    %309 = vmatprep.mubr.f32.mxu0 0.0
    %v310 = vand.u32 %v205, 4294901760
    %v311 = vsub.f32 %v205, %v310
    %v312 = vand.u32 %v311, 4294901760
    %v313 = vsub.f32 %v311, %v312
    %v314 = vand.u32 %v313, 4294901760
    %315 = vmatmul.mubr.f32.gmra.mxu0 %v314
    %v316 = vpop.f32.mrf.mxu0
    %v317 = vadd.f32 0.0, %v316
    %v318 = vpop.f32.mrf.mxu0
    %319 = vmatprep.mubr.f32.mxu0 0.0
    %v320 = vand.u32 %v208, 4294901760
    %v321 = vsub.f32 %v208, %v320
    %v322 = vand.u32 %v321, 4294901760
    %v323 = vsub.f32 %v321, %v322
    %v324 = vand.u32 %v323, 4294901760
    %325 = vmatmul.mubr.f32.gmra.mxu0 %v324
    %v326 = vpop.f32.mrf.mxu0
    %v327 = vadd.f32 0.0, %v326
    %v328 = vpop.f32.mrf.mxu0
    %329 = vdwg.mxu0
    %330 = vmatprep.subr.mxu0 0.0
    %331 = vmatpush1.msra.mxu0 0.0
    %332 = vmatprep.subr.mxu0 0.0
    %333 = vmatpush1.msra.mxu0 0.0
    %334 = vmatprep.subr.mxu0 0.0
    %335 = vmatpush1.msra.mxu0 0.0
    %336 = vmatprep.subr.mxu0 0.0
    %337 = vmatpush1.msra.mxu0 0.0
    %338 = vmatprep.subr.mxu0 0.0
    %339 = vmatpush1.msra.mxu0 0.0
    %340 = vmatprep.subr.mxu0 0.0
    %341 = vmatpush1.msra.mxu0 0.0
    %342 = vmatprep.subr.mxu0 0.0
    %343 = vmatpush1.msra.mxu0 0.0
    %344 = vmatprep.subr.mxu0 0.0
    %345 = vmatpush1.msra.mxu0 0.0
    %346 = vmatprep.subr.mxu0 0.0
    %347 = vmatpush1.msra.mxu0 0.0
    %348 = vmatprep.subr.mxu0 0.0
    %349 = vmatpush1.msra.mxu0 0.0
    %350 = vmatprep.subr.mxu0 0.0
    %351 = vmatpush1.msra.mxu0 0.0
    %352 = vmatprep.subr.mxu0 0.0
    %v353 = vand.u32 %v188, 4294901760
    %v354 = vsub.f32 %v188, %v353
    %v355 = vand.u32 %v354, 4294901760
    %v356 = vsub.f32 %v354, %v355
    %v357 = vand.u32 %v356, 4294901760
    %358 = vmatpush1.msra.mxu0 %v357
    %359 = vmatprep.subr.mxu0 0.0
    %v360 = vand.u32 %v187, 4294901760
    %v361 = vsub.f32 %v187, %v360
    %v362 = vand.u32 %v361, 4294901760
    %v363 = vsub.f32 %v361, %v362
    %v364 = vand.u32 %v363, 4294901760
    %365 = vmatpush1.msra.mxu0 %v364
    %366 = vmatprep.subr.mxu0 0.0
    %v367 = vand.u32 %v186, 4294901760
    %v368 = vsub.f32 %v186, %v367
    %v369 = vand.u32 %v368, 4294901760
    %v370 = vsub.f32 %v368, %v369
    %v371 = vand.u32 %v370, 4294901760
    %372 = vmatpush1.msra.mxu0 %v371
    %373 = vmatprep.subr.mxu0 0.0
    %v374 = vand.u32 %v185, 4294901760
    %v375 = vsub.f32 %v185, %v374
    %v376 = vand.u32 %v375, 4294901760
    %v377 = vsub.f32 %v375, %v376
    %v378 = vand.u32 %v377, 4294901760
    %379 = vmatpush1.msra.mxu0 %v378
    %380 = vmatprep.subr.mxu0 0.0
    %v381 = vand.u32 %v184, 4294901760
    %v382 = vsub.f32 %v184, %v381
    %v383 = vand.u32 %v382, 4294901760
    %v384 = vsub.f32 %v382, %v383
    %v385 = vand.u32 %v384, 4294901760
    %386 = vmatpush1.msra.mxu0 %v385
    %387 = vmatprep.subr.mxu0 0.0
    %388 = vmatpush2.msra.mxu0 0.0
    %389 = vmatprep.subr.mxu0 0.0
    %390 = vmatpush2.msra.mxu0 0.0
    %391 = vmatprep.subr.mxu0 0.0
    %392 = vmatpush2.msra.mxu0 0.0
    %393 = vmatprep.subr.mxu0 0.0
    %394 = vmatpush2.msra.mxu0 0.0
    %395 = vmatprep.subr.mxu0 0.0
    %396 = vmatpush2.msra.mxu0 0.0
    %397 = vmatprep.subr.mxu0 0.0
    %398 = vmatpush2.msra.mxu0 0.0
    %399 = vmatprep.subr.mxu0 0.0
    %400 = vmatpush2.msra.mxu0 0.0
    %401 = vmatprep.subr.mxu0 0.0
    %402 = vmatpush2.msra.mxu0 0.0
    %403 = vmatprep.subr.mxu0 0.0
    %404 = vmatpush2.msra.mxu0 0.0
    %405 = vmatprep.subr.mxu0 0.0
    %406 = vmatpush2.msra.mxu0 0.0
    %407 = vmatprep.subr.mxu0 0.0
    %408 = vmatpush2.msra.mxu0 0.0
    %409 = vmatprep.subr.mxu0 0.0
    %410 = vmatpush2.msra.mxu0 0.0
    %411 = vmatprep.subr.mxu0 0.0
    %412 = vmatpush2.msra.mxu0 0.0
    %413 = vmatprep.subr.mxu0 0.0
    %414 = vmatpush2.msra.mxu0 0.0
    %415 = vmatprep.subr.mxu0 0.0
    %416 = vmatpush2.msra.mxu0 0.0
    %417 = vmatprep.subr.mxu0 0.0
    %418 = vmatpush2.msra.mxu0 0.0
    %419 = vmatprep.mubr.f32.mxu0 0.0
    %v420 = vand.u32 %v196, 4294901760
    %421 = vmatmul.mubr.f32.gmra.mxu0 %v420
    %v422 = vpop.f32.mrf.mxu0
    %v423 = vadd.f32 %v287, %v422
    %v424 = vpop.f32.mrf.mxu0
    %425 = vmatprep.mubr.f32.mxu0 0.0
    %v426 = vand.u32 %v199, 4294901760
    %427 = vmatmul.mubr.f32.gmra.mxu0 %v426
    %v428 = vpop.f32.mrf.mxu0
    %v429 = vadd.f32 %v297, %v428
    %v430 = vpop.f32.mrf.mxu0
    %431 = vmatprep.mubr.f32.mxu0 0.0
    %v432 = vand.u32 %v202, 4294901760
    %433 = vmatmul.mubr.f32.gmra.mxu0 %v432
    %v434 = vpop.f32.mrf.mxu0
    %v435 = vadd.f32 %v307, %v434
    %v436 = vpop.f32.mrf.mxu0
    %437 = vmatprep.mubr.f32.mxu0 0.0
    %v438 = vand.u32 %v205, 4294901760
    %439 = vmatmul.mubr.f32.gmra.mxu0 %v438
    %v440 = vpop.f32.mrf.mxu0
    %v441 = vadd.f32 %v317, %v440
    %v442 = vpop.f32.mrf.mxu0
    %443 = vmatprep.mubr.f32.mxu0 0.0
    %v444 = vand.u32 %v208, 4294901760
    %445 = vmatmul.mubr.f32.gmra.mxu0 %v444
    %v446 = vpop.f32.mrf.mxu0
    %v447 = vadd.f32 %v327, %v446
    %v448 = vpop.f32.mrf.mxu0
    %449 = vdwg.mxu0
    %450 = vmatprep.subr.mxu0 0.0
    %451 = vmatpush1.msra.mxu0 0.0
    %452 = vmatprep.subr.mxu0 0.0
    %453 = vmatpush1.msra.mxu0 0.0
    %454 = vmatprep.subr.mxu0 0.0
    %455 = vmatpush1.msra.mxu0 0.0
    %456 = vmatprep.subr.mxu0 0.0
    %457 = vmatpush1.msra.mxu0 0.0
    %458 = vmatprep.subr.mxu0 0.0
    %459 = vmatpush1.msra.mxu0 0.0
    %460 = vmatprep.subr.mxu0 0.0
    %461 = vmatpush1.msra.mxu0 0.0
    %462 = vmatprep.subr.mxu0 0.0
    %463 = vmatpush1.msra.mxu0 0.0
    %464 = vmatprep.subr.mxu0 0.0
    %465 = vmatpush1.msra.mxu0 0.0
    %466 = vmatprep.subr.mxu0 0.0
    %467 = vmatpush1.msra.mxu0 0.0
    %468 = vmatprep.subr.mxu0 0.0
    %469 = vmatpush1.msra.mxu0 0.0
    %470 = vmatprep.subr.mxu0 0.0
    %471 = vmatpush1.msra.mxu0 0.0
    %472 = vmatprep.subr.mxu0 0.0
    %v473 = vand.u32 %v188, 4294901760
    %v474 = vsub.f32 %v188, %v473
    %475 = vmatpush1.msra.mxu0 %v474
    %476 = vmatprep.subr.mxu0 0.0
    %v477 = vand.u32 %v187, 4294901760
    %v478 = vsub.f32 %v187, %v477
    %479 = vmatpush1.msra.mxu0 %v478
    %480 = vmatprep.subr.mxu0 0.0
    %v481 = vand.u32 %v186, 4294901760
    %v482 = vsub.f32 %v186, %v481
    %483 = vmatpush1.msra.mxu0 %v482
    %484 = vmatprep.subr.mxu0 0.0
    %v485 = vand.u32 %v185, 4294901760
    %v486 = vsub.f32 %v185, %v485
    %487 = vmatpush1.msra.mxu0 %v486
    %488 = vmatprep.subr.mxu0 0.0
    %v489 = vand.u32 %v184, 4294901760
    %v490 = vsub.f32 %v184, %v489
    %491 = vmatpush1.msra.mxu0 %v490
    %492 = vmatprep.subr.mxu0 0.0
    %493 = vmatpush2.msra.mxu0 0.0
    %494 = vmatprep.subr.mxu0 0.0
    %495 = vmatpush2.msra.mxu0 0.0
    %496 = vmatprep.subr.mxu0 0.0
    %497 = vmatpush2.msra.mxu0 0.0
    %498 = vmatprep.subr.mxu0 0.0
    %499 = vmatpush2.msra.mxu0 0.0
    %500 = vmatprep.subr.mxu0 0.0
    %501 = vmatpush2.msra.mxu0 0.0
    %502 = vmatprep.subr.mxu0 0.0
    %503 = vmatpush2.msra.mxu0 0.0
    %504 = vmatprep.subr.mxu0 0.0
    %505 = vmatpush2.msra.mxu0 0.0
    %506 = vmatprep.subr.mxu0 0.0
    %507 = vmatpush2.msra.mxu0 0.0
    %508 = vmatprep.subr.mxu0 0.0
    %509 = vmatpush2.msra.mxu0 0.0
    %510 = vmatprep.subr.mxu0 0.0
    %511 = vmatpush2.msra.mxu0 0.0
    %512 = vmatprep.subr.mxu0 0.0
    %513 = vmatpush2.msra.mxu0 0.0
    %514 = vmatprep.subr.mxu0 0.0
    %515 = vmatpush2.msra.mxu0 0.0
    %516 = vmatprep.subr.mxu0 0.0
    %517 = vmatpush2.msra.mxu0 0.0
    %518 = vmatprep.subr.mxu0 0.0
    %519 = vmatpush2.msra.mxu0 0.0
    %520 = vmatprep.subr.mxu0 0.0
    %521 = vmatpush2.msra.mxu0 0.0
    %522 = vmatprep.subr.mxu0 0.0
    %523 = vmatpush2.msra.mxu0 0.0
    %524 = vmatprep.mubr.f32.mxu0 0.0
    %v525 = vand.u32 %v196, 4294901760
    %v526 = vsub.f32 %v196, %v525
    %527 = vmatmul.mubr.f32.gmra.mxu0 %v526
    %v528 = vpop.f32.mrf.mxu0
    %v529 = vadd.f32 %v423, %v528
    %v530 = vpop.f32.mrf.mxu0
    %531 = vmatprep.mubr.f32.mxu0 0.0
    %v532 = vand.u32 %v199, 4294901760
    %v533 = vsub.f32 %v199, %v532
    %534 = vmatmul.mubr.f32.gmra.mxu0 %v533
    %v535 = vpop.f32.mrf.mxu0
    %v536 = vadd.f32 %v429, %v535
    %v537 = vpop.f32.mrf.mxu0
    %538 = vmatprep.mubr.f32.mxu0 0.0
    %v539 = vand.u32 %v202, 4294901760
    %v540 = vsub.f32 %v202, %v539
    %541 = vmatmul.mubr.f32.gmra.mxu0 %v540
    %v542 = vpop.f32.mrf.mxu0
    %v543 = vadd.f32 %v435, %v542
    %v544 = vpop.f32.mrf.mxu0
    %545 = vmatprep.mubr.f32.mxu0 0.0
    %v546 = vand.u32 %v205, 4294901760
    %v547 = vsub.f32 %v205, %v546
    %548 = vmatmul.mubr.f32.gmra.mxu0 %v547
    %v549 = vpop.f32.mrf.mxu0
    %v550 = vadd.f32 %v441, %v549
    %v551 = vpop.f32.mrf.mxu0
    %552 = vmatprep.mubr.f32.mxu0 0.0
    %v553 = vand.u32 %v208, 4294901760
    %v554 = vsub.f32 %v208, %v553
    %555 = vmatmul.mubr.f32.gmra.mxu0 %v554
    %v556 = vpop.f32.mrf.mxu0
    %v557 = vadd.f32 %v447, %v556
    %v558 = vpop.f32.mrf.mxu0
    %559 = vdwg.mxu0
    %560 = vmatprep.subr.mxu0 0.0
    %561 = vmatpush1.msra.mxu0 0.0
    %562 = vmatprep.subr.mxu0 0.0
    %563 = vmatpush1.msra.mxu0 0.0
    %564 = vmatprep.subr.mxu0 0.0
    %565 = vmatpush1.msra.mxu0 0.0
    %566 = vmatprep.subr.mxu0 0.0
    %567 = vmatpush1.msra.mxu0 0.0
    %568 = vmatprep.subr.mxu0 0.0
    %569 = vmatpush1.msra.mxu0 0.0
    %570 = vmatprep.subr.mxu0 0.0
    %571 = vmatpush1.msra.mxu0 0.0
    %572 = vmatprep.subr.mxu0 0.0
    %573 = vmatpush1.msra.mxu0 0.0
    %574 = vmatprep.subr.mxu0 0.0
    %575 = vmatpush1.msra.mxu0 0.0
    %576 = vmatprep.subr.mxu0 0.0
    %577 = vmatpush1.msra.mxu0 0.0
    %578 = vmatprep.subr.mxu0 0.0
    %579 = vmatpush1.msra.mxu0 0.0
    %580 = vmatprep.subr.mxu0 0.0
    %581 = vmatpush1.msra.mxu0 0.0
    %582 = vmatprep.subr.mxu0 0.0
    %v583 = vand.u32 %v188, 4294901760
    %584 = vmatpush1.msra.mxu0 %v583
    %585 = vmatprep.subr.mxu0 0.0
    %v586 = vand.u32 %v187, 4294901760
    %587 = vmatpush1.msra.mxu0 %v586
    %588 = vmatprep.subr.mxu0 0.0
    %v589 = vand.u32 %v186, 4294901760
    %590 = vmatpush1.msra.mxu0 %v589
    %591 = vmatprep.subr.mxu0 0.0
    %v592 = vand.u32 %v185, 4294901760
    %593 = vmatpush1.msra.mxu0 %v592
    %594 = vmatprep.subr.mxu0 0.0
    %v595 = vand.u32 %v184, 4294901760
    %596 = vmatpush1.msra.mxu0 %v595
    %597 = vmatprep.subr.mxu0 0.0
    %598 = vmatpush2.msra.mxu0 0.0
    %599 = vmatprep.subr.mxu0 0.0
    %600 = vmatpush2.msra.mxu0 0.0
    %601 = vmatprep.subr.mxu0 0.0
    %602 = vmatpush2.msra.mxu0 0.0
    %603 = vmatprep.subr.mxu0 0.0
    %604 = vmatpush2.msra.mxu0 0.0
    %605 = vmatprep.subr.mxu0 0.0
    %606 = vmatpush2.msra.mxu0 0.0
    %607 = vmatprep.subr.mxu0 0.0
    %608 = vmatpush2.msra.mxu0 0.0
    %609 = vmatprep.subr.mxu0 0.0
    %610 = vmatpush2.msra.mxu0 0.0
    %611 = vmatprep.subr.mxu0 0.0
    %612 = vmatpush2.msra.mxu0 0.0
    %613 = vmatprep.subr.mxu0 0.0
    %614 = vmatpush2.msra.mxu0 0.0
    %615 = vmatprep.subr.mxu0 0.0
    %616 = vmatpush2.msra.mxu0 0.0
    %617 = vmatprep.subr.mxu0 0.0
    %618 = vmatpush2.msra.mxu0 0.0
    %619 = vmatprep.subr.mxu0 0.0
    %620 = vmatpush2.msra.mxu0 0.0
    %621 = vmatprep.subr.mxu0 0.0
    %622 = vmatpush2.msra.mxu0 0.0
    %623 = vmatprep.subr.mxu0 0.0
    %624 = vmatpush2.msra.mxu0 0.0
    %625 = vmatprep.subr.mxu0 0.0
    %626 = vmatpush2.msra.mxu0 0.0
    %627 = vmatprep.subr.mxu0 0.0
    %628 = vmatpush2.msra.mxu0 0.0
    %629 = vmatprep.mubr.f32.mxu0 0.0
    %v630 = vand.u32 %v196, 4294901760
    %v631 = vsub.f32 %v196, %v630
    %v632 = vand.u32 %v631, 4294901760
    %633 = vmatmul.mubr.f32.gmra.mxu0 %v632
    %v634 = vpop.f32.mrf.mxu0
    %v635 = vadd.f32 %v529, %v634
    %v636 = vpop.f32.mrf.mxu0
    %637 = vmatprep.mubr.f32.mxu0 0.0
    %v638 = vand.u32 %v199, 4294901760
    %v639 = vsub.f32 %v199, %v638
    %v640 = vand.u32 %v639, 4294901760
    %641 = vmatmul.mubr.f32.gmra.mxu0 %v640
    %v642 = vpop.f32.mrf.mxu0
    %v643 = vadd.f32 %v536, %v642
    %v644 = vpop.f32.mrf.mxu0
    %645 = vmatprep.mubr.f32.mxu0 0.0
    %v646 = vand.u32 %v202, 4294901760
    %v647 = vsub.f32 %v202, %v646
    %v648 = vand.u32 %v647, 4294901760
    %649 = vmatmul.mubr.f32.gmra.mxu0 %v648
    %v650 = vpop.f32.mrf.mxu0
    %v651 = vadd.f32 %v543, %v650
    %v652 = vpop.f32.mrf.mxu0
    %653 = vmatprep.mubr.f32.mxu0 0.0
    %v654 = vand.u32 %v205, 4294901760
    %v655 = vsub.f32 %v205, %v654
    %v656 = vand.u32 %v655, 4294901760
    %657 = vmatmul.mubr.f32.gmra.mxu0 %v656
    %v658 = vpop.f32.mrf.mxu0
    %v659 = vadd.f32 %v550, %v658
    %v660 = vpop.f32.mrf.mxu0
    %661 = vmatprep.mubr.f32.mxu0 0.0
    %v662 = vand.u32 %v208, 4294901760
    %v663 = vsub.f32 %v208, %v662
    %v664 = vand.u32 %v663, 4294901760
    %665 = vmatmul.mubr.f32.gmra.mxu0 %v664
    %v666 = vpop.f32.mrf.mxu0
    %v667 = vadd.f32 %v557, %v666
    %v668 = vpop.f32.mrf.mxu0
    %669 = vdwg.mxu0
    %670 = vmatprep.subr.mxu0 0.0
    %671 = vmatpush1.msra.mxu0 0.0
    %672 = vmatprep.subr.mxu0 0.0
    %673 = vmatpush1.msra.mxu0 0.0
    %674 = vmatprep.subr.mxu0 0.0
    %675 = vmatpush1.msra.mxu0 0.0
    %676 = vmatprep.subr.mxu0 0.0
    %677 = vmatpush1.msra.mxu0 0.0
    %678 = vmatprep.subr.mxu0 0.0
    %679 = vmatpush1.msra.mxu0 0.0
    %680 = vmatprep.subr.mxu0 0.0
    %681 = vmatpush1.msra.mxu0 0.0
    %682 = vmatprep.subr.mxu0 0.0
    %683 = vmatpush1.msra.mxu0 0.0
    %684 = vmatprep.subr.mxu0 0.0
    %685 = vmatpush1.msra.mxu0 0.0
    %686 = vmatprep.subr.mxu0 0.0
    %687 = vmatpush1.msra.mxu0 0.0
    %688 = vmatprep.subr.mxu0 0.0
    %689 = vmatpush1.msra.mxu0 0.0
    %690 = vmatprep.subr.mxu0 0.0
    %691 = vmatpush1.msra.mxu0 0.0
    %692 = vmatprep.subr.mxu0 0.0
    %v693 = vand.u32 %v188, 4294901760
    %v694 = vsub.f32 %v188, %v693
    %v695 = vand.u32 %v694, 4294901760
    %696 = vmatpush1.msra.mxu0 %v695
    %697 = vmatprep.subr.mxu0 0.0
    %v698 = vand.u32 %v187, 4294901760
    %v699 = vsub.f32 %v187, %v698
    %v700 = vand.u32 %v699, 4294901760
    %701 = vmatpush1.msra.mxu0 %v700
    %702 = vmatprep.subr.mxu0 0.0
    %v703 = vand.u32 %v186, 4294901760
    %v704 = vsub.f32 %v186, %v703
    %v705 = vand.u32 %v704, 4294901760
    %706 = vmatpush1.msra.mxu0 %v705
    %707 = vmatprep.subr.mxu0 0.0
    %v708 = vand.u32 %v185, 4294901760
    %v709 = vsub.f32 %v185, %v708
    %v710 = vand.u32 %v709, 4294901760
    %711 = vmatpush1.msra.mxu0 %v710
    %712 = vmatprep.subr.mxu0 0.0
    %v713 = vand.u32 %v184, 4294901760
    %v714 = vsub.f32 %v184, %v713
    %v715 = vand.u32 %v714, 4294901760
    %716 = vmatpush1.msra.mxu0 %v715
    %717 = vmatprep.subr.mxu0 0.0
    %718 = vmatpush2.msra.mxu0 0.0
    %719 = vmatprep.subr.mxu0 0.0
    %720 = vmatpush2.msra.mxu0 0.0
    %721 = vmatprep.subr.mxu0 0.0
    %722 = vmatpush2.msra.mxu0 0.0
    %723 = vmatprep.subr.mxu0 0.0
    %724 = vmatpush2.msra.mxu0 0.0
    %725 = vmatprep.subr.mxu0 0.0
    %726 = vmatpush2.msra.mxu0 0.0
    %727 = vmatprep.subr.mxu0 0.0
    %728 = vmatpush2.msra.mxu0 0.0
    %729 = vmatprep.subr.mxu0 0.0
    %730 = vmatpush2.msra.mxu0 0.0
    %731 = vmatprep.subr.mxu0 0.0
    %732 = vmatpush2.msra.mxu0 0.0
    %733 = vmatprep.subr.mxu0 0.0
    %734 = vmatpush2.msra.mxu0 0.0
    %735 = vmatprep.subr.mxu0 0.0
    %736 = vmatpush2.msra.mxu0 0.0
    %737 = vmatprep.subr.mxu0 0.0
    %738 = vmatpush2.msra.mxu0 0.0
    %739 = vmatprep.subr.mxu0 0.0
    %740 = vmatpush2.msra.mxu0 0.0
    %741 = vmatprep.subr.mxu0 0.0
    %742 = vmatpush2.msra.mxu0 0.0
    %743 = vmatprep.subr.mxu0 0.0
    %744 = vmatpush2.msra.mxu0 0.0
    %745 = vmatprep.subr.mxu0 0.0
    %746 = vmatpush2.msra.mxu0 0.0
    %747 = vmatprep.subr.mxu0 0.0
    %748 = vmatpush2.msra.mxu0 0.0
    %749 = vmatprep.mubr.f32.mxu0 0.0
    %v750 = vand.u32 %v196, 4294901760
    %751 = vmatmul.mubr.f32.gmra.mxu0 %v750
    %v752 = vpop.f32.mrf.mxu0
    %v753 = vadd.f32 %v635, %v752
    %v754 = vpop.f32.mrf.mxu0
    %755 = vmatprep.mubr.f32.mxu0 0.0
    %v756 = vand.u32 %v199, 4294901760
    %757 = vmatmul.mubr.f32.gmra.mxu0 %v756
    %v758 = vpop.f32.mrf.mxu0
    %v759 = vadd.f32 %v643, %v758
    %v760 = vpop.f32.mrf.mxu0
    %761 = vmatprep.mubr.f32.mxu0 0.0
    %v762 = vand.u32 %v202, 4294901760
    %763 = vmatmul.mubr.f32.gmra.mxu0 %v762
    %v764 = vpop.f32.mrf.mxu0
    %v765 = vadd.f32 %v651, %v764
    %v766 = vpop.f32.mrf.mxu0
    %767 = vmatprep.mubr.f32.mxu0 0.0
    %v768 = vand.u32 %v205, 4294901760
    %769 = vmatmul.mubr.f32.gmra.mxu0 %v768
    %v770 = vpop.f32.mrf.mxu0
    %v771 = vadd.f32 %v659, %v770
    %v772 = vpop.f32.mrf.mxu0
    %773 = vmatprep.mubr.f32.mxu0 0.0
    %v774 = vand.u32 %v208, 4294901760
    %775 = vmatmul.mubr.f32.gmra.mxu0 %v774
    %v776 = vpop.f32.mrf.mxu0
    %v777 = vadd.f32 %v667, %v776
    %v778 = vpop.f32.mrf.mxu0
    %779 = vdwg.mxu0
    %780 = vmatprep.subr.mxu0 0.0
    %781 = vmatpush1.msra.mxu0 0.0
    %782 = vmatprep.subr.mxu0 0.0
    %783 = vmatpush1.msra.mxu0 0.0
    %784 = vmatprep.subr.mxu0 0.0
    %785 = vmatpush1.msra.mxu0 0.0
    %786 = vmatprep.subr.mxu0 0.0
    %787 = vmatpush1.msra.mxu0 0.0
    %788 = vmatprep.subr.mxu0 0.0
    %789 = vmatpush1.msra.mxu0 0.0
    %790 = vmatprep.subr.mxu0 0.0
    %791 = vmatpush1.msra.mxu0 0.0
    %792 = vmatprep.subr.mxu0 0.0
    %793 = vmatpush1.msra.mxu0 0.0
    %794 = vmatprep.subr.mxu0 0.0
    %795 = vmatpush1.msra.mxu0 0.0
    %796 = vmatprep.subr.mxu0 0.0
    %797 = vmatpush1.msra.mxu0 0.0
    %798 = vmatprep.subr.mxu0 0.0
    %799 = vmatpush1.msra.mxu0 0.0
    %800 = vmatprep.subr.mxu0 0.0
    %801 = vmatpush1.msra.mxu0 0.0
    %802 = vmatprep.subr.mxu0 0.0
    %v803 = vand.u32 %v188, 4294901760
    %804 = vmatpush1.msra.mxu0 %v803
    %805 = vmatprep.subr.mxu0 0.0
    %v806 = vand.u32 %v187, 4294901760
    %807 = vmatpush1.msra.mxu0 %v806
    %808 = vmatprep.subr.mxu0 0.0
    %v809 = vand.u32 %v186, 4294901760
    %810 = vmatpush1.msra.mxu0 %v809
    %811 = vmatprep.subr.mxu0 0.0
    %v812 = vand.u32 %v185, 4294901760
    %813 = vmatpush1.msra.mxu0 %v812
    %814 = vmatprep.subr.mxu0 0.0
    %v815 = vand.u32 %v184, 4294901760
    %816 = vmatpush1.msra.mxu0 %v815
    %817 = vmatprep.subr.mxu0 0.0
    %818 = vmatpush2.msra.mxu0 0.0
    %819 = vmatprep.subr.mxu0 0.0
    %820 = vmatpush2.msra.mxu0 0.0
    %821 = vmatprep.subr.mxu0 0.0
    %822 = vmatpush2.msra.mxu0 0.0
    %823 = vmatprep.subr.mxu0 0.0
    %824 = vmatpush2.msra.mxu0 0.0
    %825 = vmatprep.subr.mxu0 0.0
    %826 = vmatpush2.msra.mxu0 0.0
    %827 = vmatprep.subr.mxu0 0.0
    %828 = vmatpush2.msra.mxu0 0.0
    %829 = vmatprep.subr.mxu0 0.0
    %830 = vmatpush2.msra.mxu0 0.0
    %831 = vmatprep.subr.mxu0 0.0
    %832 = vmatpush2.msra.mxu0 0.0
    %833 = vmatprep.subr.mxu0 0.0
    %834 = vmatpush2.msra.mxu0 0.0
    %835 = vmatprep.subr.mxu0 0.0
    %836 = vmatpush2.msra.mxu0 0.0
    %837 = vmatprep.subr.mxu0 0.0
    %838 = vmatpush2.msra.mxu0 0.0
    %839 = vmatprep.subr.mxu0 0.0
    %840 = vmatpush2.msra.mxu0 0.0
    %841 = vmatprep.subr.mxu0 0.0
    %842 = vmatpush2.msra.mxu0 0.0
    %843 = vmatprep.subr.mxu0 0.0
    %844 = vmatpush2.msra.mxu0 0.0
    %845 = vmatprep.subr.mxu0 0.0
    %846 = vmatpush2.msra.mxu0 0.0
    %847 = vmatprep.subr.mxu0 0.0
    %848 = vmatpush2.msra.mxu0 0.0
    %849 = vmatprep.mubr.f32.mxu0 0.0
    %v850 = vand.u32 %v196, 4294901760
    %851 = vmatmul.mubr.f32.gmra.mxu0 %v850
    %v852 = vpop.f32.mrf.mxu0
    %v853 = vadd.f32 %v753, %v852
    %v854 = vpop.f32.mrf.mxu0
    %855 = vmatprep.mubr.f32.mxu0 0.0
    %v856 = vand.u32 %v199, 4294901760
    %857 = vmatmul.mubr.f32.gmra.mxu0 %v856
    %v858 = vpop.f32.mrf.mxu0
    %v859 = vadd.f32 %v759, %v858
    %v860 = vpop.f32.mrf.mxu0
    %861 = vmatprep.mubr.f32.mxu0 0.0
    %v862 = vand.u32 %v202, 4294901760
    %863 = vmatmul.mubr.f32.gmra.mxu0 %v862
    %v864 = vpop.f32.mrf.mxu0
    %v865 = vadd.f32 %v765, %v864
    %v866 = vpop.f32.mrf.mxu0
    %867 = vmatprep.mubr.f32.mxu0 0.0
    %v868 = vand.u32 %v205, 4294901760
    %869 = vmatmul.mubr.f32.gmra.mxu0 %v868
    %v870 = vpop.f32.mrf.mxu0
    %v871 = vadd.f32 %v771, %v870
    %v872 = vpop.f32.mrf.mxu0
    %873 = vmatprep.mubr.f32.mxu0 0.0
    %v874 = vand.u32 %v208, 4294901760
    %875 = vmatmul.mubr.f32.gmra.mxu0 %v874
    %v876 = vpop.f32.mrf.mxu0
    %v877 = vadd.f32 %v777, %v876
    %v878 = vpop.f32.mrf.mxu0
    %879 = vdwg.mxu0
    %v880 = vmul.f32 %v853, %v853
    %v881 = vmul.f32 %v859, %v859
    %v882 = vmul.f32 %v865, %v865
    %v883 = vmul.f32 %v871, %v871
    %v884 = vadd.f32 %v880, %v881
    %v885 = vadd.f32 %v884, %v882
    %v886 = vadd.f32 %v885, %v883
    %v887 = vrot.slane %v886, 4
    %v888 = vadd.f32 %v886, %v887
    %v889 = vrot.slane %v888, 2
    %v890 = vadd.f32 %v888, %v889
    %v891 = vrot.slane %v890, 1
    %v892 = vadd.f32 %v890, %v891
    %v893 = vsub.f32 %v892, %v877
    %v894 = vmul.f32 %v893, 0.5
    %v895 = vxor.u32 %v894, 2147483648
    %v896 = vmul.f32 %v895, 1.442695
    %v897 = vpow.pop %v896
    %v898 = vadd.f32 %v897, 1.0
    %v899 = vrcp.pop %v898
    %v900 = vmul.f32 1.0, %v899
    %901 = vst [vmem:[#allocation7] sm:$0x1] %v900
    // Predicated region
    $region18: #{tpu_custom_call.1} parent=1 // pred_check
      _
    $region19: #{tpu_custom_call.1} parent=1 // pred_check_branch
      %903 = sbr.rel (0) target = $region21
    $region20: #{tpu_custom_call.1} parent=1 // pred_region
      %s905 = ssub.s32 16, 16
      %906 = vsyncadd [#allocation4], %s905
      %s908 = sshll.u32 [#allocation7], 4
      %s909 = int_to_ptr.vmem [resolvable:$true] %s908
      %911 = dma.vmem_to_hbm [thread:$0]  %s909, 16, %s2, [#allocation4]
    $region21: #{tpu_custom_call.1} parent=1 // pred_fallthru
      _
    // Predicated region
    $region22: #{tpu_custom_call.1} parent=1 // pred_check
      _
    $region23: #{tpu_custom_call.1} parent=1 // pred_check_branch
      %913 = sbr.rel (0) target = $region25
    $region24: #{tpu_custom_call.1} parent=1 // pred_region
      %914 = dma.done [#allocation4], 16
    $region25: #{tpu_custom_call.1} parent=1 // pred_fallthru
      _
    %915 = vsyncpa [#allocation3], 1
    %916 = vsyncpa [#allocation6], 1
    %917 = vsyncpa [#allocation4], 1

</llo_original>
